<compile_context>
chip_gen: v7x
topology: tpu7x:2x2x1
jax: 0.10.0
libtpu: 0.0.40
codegen_flags: <defaults>
</compile_context>

<pallas_src>
import jax
import jax.numpy as jnp
from jax.experimental import pallas as pl
from jax.experimental.pallas import tpu as pltpu

BN_EPS = 1e-5
LEAKY_SLOPE = 0.2
LANE = 128


def _round_up(x, m):
    return (x + m - 1) // m * m


def _bn_leaky(h, gamma, beta, inv_batch):
    """BatchNorm1d (train-mode batch stats, single pass) + LeakyReLU(0.2)."""
    mean = jnp.sum(h, axis=0, keepdims=True) * inv_batch
    mean_sq = jnp.sum(h * h, axis=0, keepdims=True) * inv_batch
    var = mean_sq - mean * mean                      # biased variance
    scale = gamma * jax.lax.rsqrt(var + BN_EPS)      # fused per-feature scale
    shift = beta - mean * scale                      # fused per-feature shift
    h = h * scale + shift
    return jnp.maximum(h, LEAKY_SLOPE * h)           # LeakyReLU(0.2)


def laso_kernel(a_ref, b_ref,
                w1a_ref, w1b_ref, w2_ref, w3_ref,
                bn_ref, b3_ref,
                out_ref):
    inv_batch = 1.0 / a_ref.shape[0]
    bn = bn_ref[...]                                  # (4, inner_p) in one load

    # Linear(2*latent -> inner): concat fused as two MXU dots.
    # (linear bias cancels under batch-stat BN, so it is never loaded)
    h = (jnp.dot(a_ref[...], w1a_ref[...], preferred_element_type=jnp.float32)
         + jnp.dot(b_ref[...], w1b_ref[...], preferred_element_type=jnp.float32))

    # BN -> LeakyReLU -> (Dropout = identity)
    h = _bn_leaky(h, bn[0:1, :], bn[1:2, :], inv_batch)

    # Linear(inner -> inner)  (bias cancels under BN)
    h = jnp.dot(h, w2_ref[...], preferred_element_type=jnp.float32)

    # BN -> LeakyReLU -> (Dropout = identity)
    h = _bn_leaky(h, bn[2:3, :], bn[3:4, :], inv_batch)

    # Linear(inner -> latent) -> Tanh
    o = jnp.dot(h, w3_ref[...], preferred_element_type=jnp.float32) + b3_ref[...]
    out_ref[...] = jnp.tanh(o).astype(out_ref.dtype)


def laso_forward(a, b, kp):
    """a, b: (B, latent) float32.  kp: prepared/padded kernel params.

    Returns (B, latent) float32.
    """
    B, latent = a.shape
    latent_p = kp["w3"].shape[1]

    args = (a, b, kp["w1a"], kp["w1b"], kp["w2"], kp["w3"], kp["bn"], kp["b3"])
    vmem_spec = pl.BlockSpec(memory_space=pltpu.MemorySpace.VMEM)

    out = pl.pallas_call(
        laso_kernel,
        out_shape=jax.ShapeDtypeStruct((B, latent_p), jnp.float32),
        in_specs=[vmem_spec] * len(args),
        out_specs=vmem_spec,
    )(*args)

    if latent_p != latent:
        out = out[:, :latent]
    return out


def init_params(key, latent_dim, inner_dim):
    """PyTorch-layout params (Linear default init: uniform +-1/sqrt(fan_in)).

    Weights stored as (in_features, out_features); biases as (features,).
    """
    ks = jax.random.split(key, 6)

    def lin(kw, kb, fan_in, fan_out):
        bound = 1.0 / jnp.sqrt(jnp.float32(fan_in))
        w = jax.random.uniform(kw, (fan_in, fan_out), jnp.float32, -bound, bound)
        bb = jax.random.uniform(kb, (fan_out,), jnp.float32, -bound, bound)
        return w, bb

    w1, b1 = lin(ks[0], ks[1], 2 * latent_dim, inner_dim)
    w2, b2 = lin(ks[2], ks[3], inner_dim, inner_dim)
    w3, b3 = lin(ks[4], ks[5], inner_dim, latent_dim)

    ones = jnp.ones((inner_dim,), jnp.float32)
    zeros = jnp.zeros((inner_dim,), jnp.float32)
    return dict(w1=w1, b1=b1, g1=ones, be1=zeros,
                w2=w2, b2=b2, g2=ones, be2=zeros,
                w3=w3, b3=b3)


def prepare_kernel_params(raw, latent_dim, inner_dim):
    """Pad feature dims to multiples of 128, split w1, pack BN vectors.

    Padding is zero-filled and chosen so every padded feature column stays
    exactly zero through the whole network (gamma_pad = 0, weight pads = 0),
    so slicing the padded output columns off recovers the exact result.
    """
    inner_p = _round_up(inner_dim, LANE)
    latent_p = _round_up(latent_dim, LANE)

    def pad2(x, rows, cols):
        r, c = x.shape
        return jnp.pad(x, ((0, rows - r), (0, cols - c)))

    def pad1(x, n):
        return jnp.pad(x, (0, n - x.shape[0]))

    # Split the first Linear at row `latent_dim` (concat fusion), pad out-dim.
    w1a = pad2(raw["w1"][:latent_dim, :], latent_dim, inner_p)
    w1b = pad2(raw["w1"][latent_dim:, :], latent_dim, inner_p)
    w2 = pad2(raw["w2"], inner_p, inner_p)
    w3 = pad2(raw["w3"], inner_p, latent_p)

    # Pack per-feature BN vectors into a single (4, inner_p) array:
    # rows = [gamma1, beta1, gamma2, beta2]; pads are zero (kills pad columns).
    bn = jnp.stack([pad1(raw["g1"], inner_p), pad1(raw["be1"], inner_p),
                    pad1(raw["g2"], inner_p), pad1(raw["be2"], inner_p)], axis=0)

    b3 = pad1(raw["b3"], latent_p).reshape(1, latent_p)

    return dict(w1a=w1a, w1b=w1b, w2=w2, w3=w3, bn=bn, b3=b3)


def _reference(a, b, p):
    """Pure-JAX reference (unpadded PyTorch-layout params, including b1/b2)."""
    h = jnp.concatenate([a, b], axis=1) @ p["w1"] + p["b1"]

    def bn_leaky(h, g, be):
        m = jnp.mean(h, axis=0, keepdims=True)
        v = jnp.mean((h - m) ** 2, axis=0, keepdims=True)
        h = (h - m) / jnp.sqrt(v + BN_EPS) * g + be
        return jnp.where(h >= 0, h, LEAKY_SLOPE * h)

    h = bn_leaky(h, p["g1"], p["be1"])
    h = h @ p["w2"] + p["b2"]
    h = bn_leaky(h, p["g2"], p["be2"])
    return jnp.tanh(h @ p["w3"] + p["b3"])


if __name__ == "__main__":
    # Small shapes consistent with the module: LaSOModule(inner_dim=64, latent_dim=32)
    B, LATENT, INNER = 8, 32, 64

    key = jax.random.PRNGKey(0)
    k_a, k_b, k_p = jax.random.split(key, 3)
    a = jax.random.normal(k_a, (B, LATENT), jnp.float32)
    b = jax.random.normal(k_b, (B, LATENT), jnp.float32)

    raw_params = init_params(k_p, LATENT, INNER)
    kernel_params = prepare_kernel_params(raw_params, LATENT, INNER)

    out = jax.jit(laso_forward)(a, b, kernel_params)
    out = jax.block_until_ready(out)

    ref = _reference(a, b, raw_params)
    assert out.shape == (B, LATENT) and out.dtype == jnp.float32
    assert jnp.allclose(out, ref, atol=1e-4, rtol=1e-4), "mismatch vs reference"

    print("KERNEL_OK")
</pallas_src>

<mosaic_0001>
module attributes {stable_mosaic.version = 11 : i64} {
  func.func @laso_kernel(%arg0: memref<8x32xf32, #tpu.memory_space<vmem>>, %arg1: memref<8x32xf32, #tpu.memory_space<vmem>>, %arg2: memref<32x128xf32, #tpu.memory_space<vmem>>, %arg3: memref<32x128xf32, #tpu.memory_space<vmem>>, %arg4: memref<128x128xf32, #tpu.memory_space<vmem>>, %arg5: memref<128x128xf32, #tpu.memory_space<vmem>>, %arg6: memref<4x128xf32, #tpu.memory_space<vmem>>, %arg7: memref<1x128xf32, #tpu.memory_space<vmem>>, %arg8: memref<8x128xf32, #tpu.memory_space<vmem>>) attributes {dimension_semantics = [], scalar_prefetch = 0 : i64, scratch_operands = 0 : i64, tpu.core_type = #tpu.core_type<tc>} {
    %c0 = arith.constant 0 : index
    %c0_0 = arith.constant 0 : index
    %0 = vector.load %arg6[%c0, %c0_0] : memref<4x128xf32, #tpu.memory_space<vmem>>, vector<4x128xf32>
    %c0_1 = arith.constant 0 : index
    %c0_2 = arith.constant 0 : index
    %1 = vector.load %arg0[%c0_1, %c0_2] : memref<8x32xf32, #tpu.memory_space<vmem>>, vector<8x32xf32>
    %c0_3 = arith.constant 0 : index
    %c0_4 = arith.constant 0 : index
    %2 = vector.load %arg2[%c0_3, %c0_4] : memref<32x128xf32, #tpu.memory_space<vmem>>, vector<32x128xf32>
    %cst = arith.constant dense<0.000000e+00> : vector<8x128xf32>
    %3 = tpu.matmul %1, %2, %cst {dimension_numbers = #tpu.dot_dimension_numbers<[1], [0], [0], [1], [0, 0, 1, 1], [], []>} : vector<8x32xf32>, vector<32x128xf32>, vector<8x128xf32> -> vector<8x128xf32>
    %c0_5 = arith.constant 0 : index
    %c0_6 = arith.constant 0 : index
    %4 = vector.load %arg1[%c0_5, %c0_6] : memref<8x32xf32, #tpu.memory_space<vmem>>, vector<8x32xf32>
    %c0_7 = arith.constant 0 : index
    %c0_8 = arith.constant 0 : index
    %5 = vector.load %arg3[%c0_7, %c0_8] : memref<32x128xf32, #tpu.memory_space<vmem>>, vector<32x128xf32>
    %cst_9 = arith.constant dense<0.000000e+00> : vector<8x128xf32>
    %6 = tpu.matmul %4, %5, %cst_9 {dimension_numbers = #tpu.dot_dimension_numbers<[1], [0], [0], [1], [0, 0, 1, 1], [], []>} : vector<8x32xf32>, vector<32x128xf32>, vector<8x128xf32> -> vector<8x128xf32>
    %7 = arith.addf %3, %6 : vector<8x128xf32>
    %8 = vector.extract_strided_slice %0 {offsets = [0, 0], sizes = [1, 128], strides = [1, 1]} : vector<4x128xf32> to vector<1x128xf32>
    %9 = vector.extract_strided_slice %0 {offsets = [1, 0], sizes = [1, 128], strides = [1, 1]} : vector<4x128xf32> to vector<1x128xf32>
    %cst_10 = arith.constant dense<0.000000e+00> : vector<128xf32>
    %10 = vector.multi_reduction <add>, %7, %cst_10 [0] : vector<8x128xf32> to vector<128xf32>
    %11 = vector.shape_cast %10 : vector<128xf32> to vector<1x128xf32>
    %cst_11 = arith.constant 1.250000e-01 : f32
    %12 = vector.broadcast %cst_11 : f32 to vector<1x128xf32>
    %13 = arith.mulf %11, %12 : vector<1x128xf32>
    %14 = arith.mulf %7, %7 : vector<8x128xf32>
    %cst_12 = arith.constant dense<0.000000e+00> : vector<128xf32>
    %15 = vector.multi_reduction <add>, %14, %cst_12 [0] : vector<8x128xf32> to vector<128xf32>
    %16 = vector.shape_cast %15 : vector<128xf32> to vector<1x128xf32>
    %cst_13 = arith.constant 1.250000e-01 : f32
    %17 = vector.broadcast %cst_13 : f32 to vector<1x128xf32>
    %18 = arith.mulf %16, %17 : vector<1x128xf32>
    %19 = arith.mulf %13, %13 : vector<1x128xf32>
    %20 = arith.subf %18, %19 : vector<1x128xf32>
    %cst_14 = arith.constant 9.99999974E-6 : f32
    %21 = vector.broadcast %cst_14 : f32 to vector<1x128xf32>
    %22 = arith.addf %20, %21 : vector<1x128xf32>
    %23 = math.rsqrt %22 : vector<1x128xf32>
    %24 = arith.mulf %8, %23 : vector<1x128xf32>
    %25 = arith.mulf %13, %24 : vector<1x128xf32>
    %26 = arith.subf %9, %25 : vector<1x128xf32>
    %27 = vector.broadcast %24 : vector<1x128xf32> to vector<8x128xf32>
    %28 = arith.mulf %7, %27 : vector<8x128xf32>
    %29 = vector.broadcast %26 : vector<1x128xf32> to vector<8x128xf32>
    %30 = arith.addf %28, %29 : vector<8x128xf32>
    %cst_15 = arith.constant 2.000000e-01 : f32
    %31 = vector.broadcast %cst_15 : f32 to vector<8x128xf32>
    %32 = arith.mulf %31, %30 : vector<8x128xf32>
    %33 = arith.maximumf %30, %32 : vector<8x128xf32>
    %c0_16 = arith.constant 0 : index
    %c0_17 = arith.constant 0 : index
    %34 = vector.load %arg4[%c0_16, %c0_17] : memref<128x128xf32, #tpu.memory_space<vmem>>, vector<128x128xf32>
    %cst_18 = arith.constant dense<0.000000e+00> : vector<8x128xf32>
    %35 = tpu.matmul %33, %34, %cst_18 {dimension_numbers = #tpu.dot_dimension_numbers<[1], [0], [0], [1], [0, 0, 1, 1], [], []>} : vector<8x128xf32>, vector<128x128xf32>, vector<8x128xf32> -> vector<8x128xf32>
    %36 = vector.extract_strided_slice %0 {offsets = [2, 0], sizes = [1, 128], strides = [1, 1]} : vector<4x128xf32> to vector<1x128xf32>
    %37 = vector.extract_strided_slice %0 {offsets = [3, 0], sizes = [1, 128], strides = [1, 1]} : vector<4x128xf32> to vector<1x128xf32>
    %cst_19 = arith.constant dense<0.000000e+00> : vector<128xf32>
    %38 = vector.multi_reduction <add>, %35, %cst_19 [0] : vector<8x128xf32> to vector<128xf32>
    %39 = vector.shape_cast %38 : vector<128xf32> to vector<1x128xf32>
    %cst_20 = arith.constant 1.250000e-01 : f32
    %40 = vector.broadcast %cst_20 : f32 to vector<1x128xf32>
    %41 = arith.mulf %39, %40 : vector<1x128xf32>
    %42 = arith.mulf %35, %35 : vector<8x128xf32>
    %cst_21 = arith.constant dense<0.000000e+00> : vector<128xf32>
    %43 = vector.multi_reduction <add>, %42, %cst_21 [0] : vector<8x128xf32> to vector<128xf32>
    %44 = vector.shape_cast %43 : vector<128xf32> to vector<1x128xf32>
    %cst_22 = arith.constant 1.250000e-01 : f32
    %45 = vector.broadcast %cst_22 : f32 to vector<1x128xf32>
    %46 = arith.mulf %44, %45 : vector<1x128xf32>
    %47 = arith.mulf %41, %41 : vector<1x128xf32>
    %48 = arith.subf %46, %47 : vector<1x128xf32>
    %cst_23 = arith.constant 9.99999974E-6 : f32
    %49 = vector.broadcast %cst_23 : f32 to vector<1x128xf32>
    %50 = arith.addf %48, %49 : vector<1x128xf32>
    %51 = math.rsqrt %50 : vector<1x128xf32>
    %52 = arith.mulf %36, %51 : vector<1x128xf32>
    %53 = arith.mulf %41, %52 : vector<1x128xf32>
    %54 = arith.subf %37, %53 : vector<1x128xf32>
    %55 = vector.broadcast %52 : vector<1x128xf32> to vector<8x128xf32>
    %56 = arith.mulf %35, %55 : vector<8x128xf32>
    %57 = vector.broadcast %54 : vector<1x128xf32> to vector<8x128xf32>
    %58 = arith.addf %56, %57 : vector<8x128xf32>
    %cst_24 = arith.constant 2.000000e-01 : f32
    %59 = vector.broadcast %cst_24 : f32 to vector<8x128xf32>
    %60 = arith.mulf %59, %58 : vector<8x128xf32>
    %61 = arith.maximumf %58, %60 : vector<8x128xf32>
    %c0_25 = arith.constant 0 : index
    %c0_26 = arith.constant 0 : index
    %62 = vector.load %arg5[%c0_25, %c0_26] : memref<128x128xf32, #tpu.memory_space<vmem>>, vector<128x128xf32>
    %cst_27 = arith.constant dense<0.000000e+00> : vector<8x128xf32>
    %63 = tpu.matmul %61, %62, %cst_27 {dimension_numbers = #tpu.dot_dimension_numbers<[1], [0], [0], [1], [0, 0, 1, 1], [], []>} : vector<8x128xf32>, vector<128x128xf32>, vector<8x128xf32> -> vector<8x128xf32>
    %c0_28 = arith.constant 0 : index
    %c0_29 = arith.constant 0 : index
    %64 = vector.load %arg7[%c0_28, %c0_29] : memref<1x128xf32, #tpu.memory_space<vmem>>, vector<1x128xf32>
    %65 = vector.broadcast %64 : vector<1x128xf32> to vector<8x128xf32>
    %66 = arith.addf %63, %65 : vector<8x128xf32>
    %67 = math.tanh %66 : vector<8x128xf32>
    %c0_30 = arith.constant 0 : index
    %c0_31 = arith.constant 0 : index
    %68 = vector.load %arg8[%c0_30, %c0_31] : memref<8x128xf32, #tpu.memory_space<vmem>>, vector<8x128xf32>
    tpu.vector_store %arg8[%c0_30, %c0_31], %67 {strides = array<i32>} : memref<8x128xf32, #tpu.memory_space<vmem>>, vector<8x128xf32>,
    return
  }
}

</mosaic_0001>

<llo_original>
// kernel: laso_forward.1
$region0: #{laso_forward.1}
  #allocation0 [shape = 'u32[]', space=smem, size = 0x4, offset = 0x4, fixed_abs, tag = 'smem constant byte address 0x4 - core index']
  #allocation1 [shape = 'u32[144,128]{1,0:T(1,128)}', space=vmem, size = 0x12000, scoped, tag = 'internal scratch']
  %s0 = inlined_call_operand.hbm [shape: f32[8,32], index: 0, kind: input, shape index: {}]
  %s1 = inlined_call_operand.hbm [shape: f32[8,32], index: 1, kind: input, shape index: {}]
  %s2 = inlined_call_operand.hbm [shape: f32[32,128], index: 2, kind: input, shape index: {}]
  %s3 = inlined_call_operand.hbm [shape: f32[32,128], index: 3, kind: input, shape index: {}]
  %s4 = inlined_call_operand.hbm [shape: f32[128,128], index: 4, kind: input, shape index: {}]
  %s5 = inlined_call_operand.hbm [shape: f32[128,128], index: 5, kind: input, shape index: {}]
  %s6 = inlined_call_operand.vmem [shape: f32[4,128], index: 6, kind: input, shape index: {}]
  %s7 = inlined_call_operand.vmem [shape: f32[1,128], index: 7, kind: input, shape index: {}]
  %s8 = inlined_call_operand.hbm [shape: f32[8,128], index: 8, kind: output, shape index: {}]
  %s9 = sld [smem:[#allocation0]]
  $region66: #{laso_forward.1} parent=0
    _
  %s11 = ssub.s32 1, %s9
  %s12 = scalar_select 0, %s11, %s9
  $region1: #{laso_forward.1} parent=0
    #allocation2 [shape = 'u8[4096]{0}', space=vmem, size = 0x1000, scoped, tag = 'input window, operand 0, single buffered']
    #allocation3 [shape = 's32[1]{0}', space=sflag, size = 0x4, scoped, tag = 'scoped memory for laso_forward.1']
    #allocation4 [shape = 's32[1]{0}', space=sflag, size = 0x4, scoped, tag = 'scoped memory for laso_forward.1']
    #allocation5 [shape = 'u8[4096]{0}', space=vmem, size = 0x1000, scoped, tag = 'input window, operand 1, single buffered']
    #allocation6 [shape = 's32[1]{0}', space=sflag, size = 0x4, scoped, tag = 'scoped memory for laso_forward.1']
    #allocation7 [shape = 'u8[16384]{0}', space=vmem, size = 0x4000, scoped, tag = 'input window, operand 2, single buffered']
    #allocation8 [shape = 'u8[16384]{0}', space=vmem, size = 0x4000, scoped, tag = 'input window, operand 3, single buffered']
    #allocation9 [shape = 's32[1]{0}', space=sflag, size = 0x4, scoped, tag = 'scoped memory for laso_forward.1']
    #allocation10 [shape = 'u8[65536]{0}', space=vmem, size = 0x10000, scoped, tag = 'input window, operand 4, single buffered']
    #allocation11 [shape = 'u8[65536]{0}', space=vmem, size = 0x10000, scoped, tag = 'input window, operand 5, single buffered']
    #allocation12 [shape = 's32[1]{0}', space=sflag, size = 0x4, scoped, tag = 'scoped memory for laso_forward.1']
    #allocation13 [shape = 'u8[4096]{0}', space=vmem, size = 0x1000, scoped, tag = 'output window, operand 0, single buffered']
    %13 = vsyncpa [#allocation3], 0
    %14 = vsyncpa [#allocation6], 0
    %15 = vsyncpa [#allocation9], 0
    %16 = vsyncpa [#allocation12], 0
    %17 = vsyncpa [#allocation4], 0
    // Predicated region
    $region2: #{laso_forward.1} parent=1 // pred_check
      _
    $region3: #{laso_forward.1} parent=1 // pred_check_branch
      %19 = sbr.rel (0) target = $region5
    $region4: #{laso_forward.1} parent=1 // pred_region
      %s21 = ssub.s32 128, 128
      %22 = vsyncadd [#allocation3], %s21
      %s24 = sshll.u32 [#allocation2], 4
      %s25 = int_to_ptr.vmem [resolvable:$true] %s24
      %27 = dma.hbm_to_vmem [thread:$0]  %s0, 128, %s25, [#allocation3]
    $region5: #{laso_forward.1} parent=1 // pred_fallthru
      _
    // Predicated region
    $region6: #{laso_forward.1} parent=1 // pred_check
      _
    $region7: #{laso_forward.1} parent=1 // pred_check_branch
      %29 = sbr.rel (0) target = $region9
    $region8: #{laso_forward.1} parent=1 // pred_region
      %s31 = ssub.s32 128, 128
      %32 = vsyncadd [#allocation6], %s31
      %s34 = sshll.u32 [#allocation5], 4
      %s35 = int_to_ptr.vmem [resolvable:$true] %s34
      %37 = dma.hbm_to_vmem [thread:$0]  %s1, 128, %s35, [#allocation6]
    $region9: #{laso_forward.1} parent=1 // pred_fallthru
      _
    // Predicated region
    $region10: #{laso_forward.1} parent=1 // pred_check
      _
    $region11: #{laso_forward.1} parent=1 // pred_check_branch
      %39 = sbr.rel (0) target = $region13
    $region12: #{laso_forward.1} parent=1 // pred_region
      %s41 = ssub.s32 512, 512
      %42 = vsyncadd [#allocation6], %s41
      %s43 = sshll.u32 [#allocation7], 4
      %s44 = int_to_ptr.vmem [resolvable:$true] %s43
      %49 = dma.hbm_to_vmem [thread:$0]  %s2, 512, %s44, [#allocation6], 128, 128, 8
    $region13: #{laso_forward.1} parent=1 // pred_fallthru
      _
    // Predicated region
    $region14: #{laso_forward.1} parent=1 // pred_check
      _
    $region15: #{laso_forward.1} parent=1 // pred_check_branch
      %51 = sbr.rel (0) target = $region17
    $region16: #{laso_forward.1} parent=1 // pred_region
      %s53 = ssub.s32 512, 512
      %54 = vsyncadd [#allocation9], %s53
      %s55 = sshll.u32 [#allocation8], 4
      %s56 = int_to_ptr.vmem [resolvable:$true] %s55
      %61 = dma.hbm_to_vmem [thread:$0]  %s3, 512, %s56, [#allocation9], 128, 128, 8
    $region17: #{laso_forward.1} parent=1 // pred_fallthru
      _
    // Predicated region
    $region18: #{laso_forward.1} parent=1 // pred_check
      _
    $region19: #{laso_forward.1} parent=1 // pred_check_branch
      %63 = sbr.rel (0) target = $region21
    $region20: #{laso_forward.1} parent=1 // pred_region
      %s65 = ssub.s32 2048, 2048
      %66 = vsyncadd [#allocation9], %s65
      %s67 = sshll.u32 [#allocation10], 4
      %s68 = int_to_ptr.vmem [resolvable:$true] %s67
      %73 = dma.hbm_to_vmem [thread:$0]  %s4, 2048, %s68, [#allocation9], 128, 128, 8
    $region21: #{laso_forward.1} parent=1 // pred_fallthru
      _
    // Predicated region
    $region22: #{laso_forward.1} parent=1 // pred_check
      _
    $region23: #{laso_forward.1} parent=1 // pred_check_branch
      %75 = sbr.rel (0) target = $region25
    $region24: #{laso_forward.1} parent=1 // pred_region
      %s77 = ssub.s32 2048, 2048
      %78 = vsyncadd [#allocation12], %s77
      %s79 = sshll.u32 [#allocation11], 4
      %s80 = int_to_ptr.vmem [resolvable:$true] %s79
      %85 = dma.hbm_to_vmem [thread:$0]  %s5, 2048, %s80, [#allocation12], 128, 128, 8
    $region25: #{laso_forward.1} parent=1 // pred_fallthru
      _
    // Predicated region
    $region26: #{laso_forward.1} parent=1 // pred_check
      _
    $region27: #{laso_forward.1} parent=1 // pred_check_branch
      %87 = sbr.rel (0) target = $region29
    $region28: #{laso_forward.1} parent=1 // pred_region
      _
    $region29: #{laso_forward.1} parent=1 // pred_fallthru
      _
    // Predicated region
    $region30: #{laso_forward.1} parent=1 // pred_check
      _
    $region31: #{laso_forward.1} parent=1 // pred_check_branch
      %89 = sbr.rel (0) target = $region33
    $region32: #{laso_forward.1} parent=1 // pred_region
      _
    $region33: #{laso_forward.1} parent=1 // pred_fallthru
      _
    // Predicated region
    $region34: #{laso_forward.1} parent=1 // pred_check
      _
    $region35: #{laso_forward.1} parent=1 // pred_check_branch
      %91 = sbr.rel (0) target = $region37
    $region36: #{laso_forward.1} parent=1 // pred_region
      %92 = dma.done [#allocation3], 128
    $region37: #{laso_forward.1} parent=1 // pred_fallthru
      _
    // Predicated region
    $region38: #{laso_forward.1} parent=1 // pred_check
      _
    $region39: #{laso_forward.1} parent=1 // pred_check_branch
      %94 = sbr.rel (0) target = $region41
    $region40: #{laso_forward.1} parent=1 // pred_region
      %95 = dma.done [#allocation6], 128
    $region41: #{laso_forward.1} parent=1 // pred_fallthru
      _
    // Predicated region
    $region42: #{laso_forward.1} parent=1 // pred_check
      _
    $region43: #{laso_forward.1} parent=1 // pred_check_branch
      %97 = sbr.rel (0) target = $region45
    $region44: #{laso_forward.1} parent=1 // pred_region
      %98 = dma.done [#allocation6], 512
    $region45: #{laso_forward.1} parent=1 // pred_fallthru
      _
    // Predicated region
    $region46: #{laso_forward.1} parent=1 // pred_check
      _
    $region47: #{laso_forward.1} parent=1 // pred_check_branch
      %100 = sbr.rel (0) target = $region49
    $region48: #{laso_forward.1} parent=1 // pred_region
      %101 = dma.done [#allocation9], 512
    $region49: #{laso_forward.1} parent=1 // pred_fallthru
      _
    // Predicated region
    $region50: #{laso_forward.1} parent=1 // pred_check
      _
    $region51: #{laso_forward.1} parent=1 // pred_check_branch
      %103 = sbr.rel (0) target = $region53
    $region52: #{laso_forward.1} parent=1 // pred_region
      %104 = dma.done [#allocation9], 2048
    $region53: #{laso_forward.1} parent=1 // pred_fallthru
      _
    // Predicated region
    $region54: #{laso_forward.1} parent=1 // pred_check
      _
    $region55: #{laso_forward.1} parent=1 // pred_check_branch
      %106 = sbr.rel (0) target = $region57
    $region56: #{laso_forward.1} parent=1 // pred_region
      %107 = dma.done [#allocation12], 2048
    $region57: #{laso_forward.1} parent=1 // pred_fallthru
      _
    %v108 = vld [vmem:[%s6] sm:$0xf]
    %v109 = vld [vmem:[#allocation2] sm:$0xff]
    %v110 = vld [vmem:[#allocation7] sm:$0xff]
    %v111 = vld [vmem:[#allocation7 + $0x8] sm:$0xff]
    %v112 = vld [vmem:[#allocation7 + $0x10] sm:$0xff]
    %v113 = vld [vmem:[#allocation7 + $0x18] sm:$0xff]
    %v114 = vld [vmem:[#allocation5] sm:$0xff]
    %v115 = vld [vmem:[#allocation8] sm:$0xff]
    %v116 = vld [vmem:[#allocation8 + $0x8] sm:$0xff]
    %v117 = vld [vmem:[#allocation8 + $0x10] sm:$0xff]
    %v118 = vld [vmem:[#allocation8 + $0x18] sm:$0xff]
    %vm119 = vcmask 261120
    %v121 = vsel %vm119, %v114, 0
    %123 = vmatprep.subr.mxu0 0.0
    %124 = vmatpush1.msra.mxu0 %v115
    %125 = vmatprep.subr.mxu0 0.0
    %126 = vmatpush1.msra.mxu0 %v116
    %127 = vmatprep.subr.mxu0 0.0
    %128 = vmatpush1.msra.mxu0 %v117
    %129 = vmatprep.subr.mxu0 0.0
    %130 = vmatpush1.msra.mxu0 %v118
    %131 = vmatprep.subr.mxu0 0.0
    %132 = vmatpush1.msra.mxu0 0.0
    %133 = vmatprep.subr.mxu0 0.0
    %134 = vmatpush1.msra.mxu0 0.0
    %135 = vmatprep.subr.mxu0 0.0
    %136 = vmatpush1.msra.mxu0 0.0
    %137 = vmatprep.subr.mxu0 0.0
    %138 = vmatpush1.msra.mxu0 0.0
    %139 = vmatprep.subr.mxu0 0.0
    %140 = vmatpush1.msra.mxu0 0.0
    %141 = vmatprep.subr.mxu0 0.0
    %142 = vmatpush1.msra.mxu0 0.0
    %143 = vmatprep.subr.mxu0 0.0
    %144 = vmatpush1.msra.mxu0 0.0
    %145 = vmatprep.subr.mxu0 0.0
    %146 = vmatpush1.msra.mxu0 0.0
    %147 = vmatprep.subr.mxu0 0.0
    %148 = vmatpush1.msra.mxu0 0.0
    %149 = vmatprep.subr.mxu0 0.0
    %150 = vmatpush1.msra.mxu0 0.0
    %151 = vmatprep.subr.mxu0 0.0
    %152 = vmatpush1.msra.mxu0 0.0
    %153 = vmatprep.subr.mxu0 0.0
    %154 = vmatpush1.msra.mxu0 0.0
    %155 = vmatprep.subr.mxu0 0.0
    %156 = vmatpush1.msra.mxu0 0.0
    %157 = vmatprep.subr.mxu0 0.0
    %158 = vmatpush1.msra.mxu0 0.0
    %159 = vmatprep.subr.mxu0 0.0
    %160 = vmatpush1.msra.mxu0 0.0
    %161 = vmatprep.subr.mxu0 0.0
    %162 = vmatpush1.msra.mxu0 0.0
    %163 = vmatprep.subr.mxu0 0.0
    %164 = vmatpush1.msra.mxu0 0.0
    %165 = vmatprep.subr.mxu0 0.0
    %166 = vmatpush1.msra.mxu0 0.0
    %167 = vmatprep.subr.mxu0 0.0
    %168 = vmatpush1.msra.mxu0 0.0
    %169 = vmatprep.subr.mxu0 0.0
    %170 = vmatpush1.msra.mxu0 0.0
    %171 = vmatprep.subr.mxu0 0.0
    %172 = vmatpush1.msra.mxu0 0.0
    %173 = vmatprep.subr.mxu0 0.0
    %174 = vmatpush1.msra.mxu0 0.0
    %175 = vmatprep.subr.mxu0 0.0
    %176 = vmatpush1.msra.mxu0 0.0
    %177 = vmatprep.subr.mxu0 0.0
    %178 = vmatpush1.msra.mxu0 0.0
    %179 = vmatprep.subr.mxu0 0.0
    %180 = vmatpush1.msra.mxu0 0.0
    %181 = vmatprep.subr.mxu0 0.0
    %182 = vmatpush1.msra.mxu0 0.0
    %183 = vmatprep.subr.mxu0 0.0
    %184 = vmatpush1.msra.mxu0 0.0
    %185 = vmatprep.subr.mxu0 0.0
    %186 = vmatpush1.msra.mxu0 0.0
    %187 = vmatprep.mubr.f32.mxu0 0.0
    %188 = vmatmul.mubr.f32.gmra.mrb[0].mxu0 %v121
    %v189 = vpop.f32.mrb[0].mxu0
    %v190 = vadd.f32 0.0, %v189
    %v191 = vpop.f32.mrb[0].mxu0
    %192 = vdwg.mxu0
    %v194 = vsel %vm119, %v109, 0
    %196 = vmatprep.subr.mxu0 0.0
    %197 = vmatpush1.msra.mxu0 %v110
    %198 = vmatprep.subr.mxu0 0.0
    %199 = vmatpush1.msra.mxu0 %v111
    %200 = vmatprep.subr.mxu0 0.0
    %201 = vmatpush1.msra.mxu0 %v112
    %202 = vmatprep.subr.mxu0 0.0
    %203 = vmatpush1.msra.mxu0 %v113
    %204 = vmatprep.subr.mxu0 0.0
    %205 = vmatpush1.msra.mxu0 0.0
    %206 = vmatprep.subr.mxu0 0.0
    %207 = vmatpush1.msra.mxu0 0.0
    %208 = vmatprep.subr.mxu0 0.0
    %209 = vmatpush1.msra.mxu0 0.0
    %210 = vmatprep.subr.mxu0 0.0
    %211 = vmatpush1.msra.mxu0 0.0
    %212 = vmatprep.subr.mxu0 0.0
    %213 = vmatpush1.msra.mxu0 0.0
    %214 = vmatprep.subr.mxu0 0.0
    %215 = vmatpush1.msra.mxu0 0.0
    %216 = vmatprep.subr.mxu0 0.0
    %217 = vmatpush1.msra.mxu0 0.0
    %218 = vmatprep.subr.mxu0 0.0
    %219 = vmatpush1.msra.mxu0 0.0
    %220 = vmatprep.subr.mxu0 0.0
    %221 = vmatpush1.msra.mxu0 0.0
    %222 = vmatprep.subr.mxu0 0.0
    %223 = vmatpush1.msra.mxu0 0.0
    %224 = vmatprep.subr.mxu0 0.0
    %225 = vmatpush1.msra.mxu0 0.0
    %226 = vmatprep.subr.mxu0 0.0
    %227 = vmatpush1.msra.mxu0 0.0
    %228 = vmatprep.subr.mxu0 0.0
    %229 = vmatpush1.msra.mxu0 0.0
    %230 = vmatprep.subr.mxu0 0.0
    %231 = vmatpush1.msra.mxu0 0.0
    %232 = vmatprep.subr.mxu0 0.0
    %233 = vmatpush1.msra.mxu0 0.0
    %234 = vmatprep.subr.mxu0 0.0
    %235 = vmatpush1.msra.mxu0 0.0
    %236 = vmatprep.subr.mxu0 0.0
    %237 = vmatpush1.msra.mxu0 0.0
    %238 = vmatprep.subr.mxu0 0.0
    %239 = vmatpush1.msra.mxu0 0.0
    %240 = vmatprep.subr.mxu0 0.0
    %241 = vmatpush1.msra.mxu0 0.0
    %242 = vmatprep.subr.mxu0 0.0
    %243 = vmatpush1.msra.mxu0 0.0
    %244 = vmatprep.subr.mxu0 0.0
    %245 = vmatpush1.msra.mxu0 0.0
    %246 = vmatprep.subr.mxu0 0.0
    %247 = vmatpush1.msra.mxu0 0.0
    %248 = vmatprep.subr.mxu0 0.0
    %249 = vmatpush1.msra.mxu0 0.0
    %250 = vmatprep.subr.mxu0 0.0
    %251 = vmatpush1.msra.mxu0 0.0
    %252 = vmatprep.subr.mxu0 0.0
    %253 = vmatpush1.msra.mxu0 0.0
    %254 = vmatprep.subr.mxu0 0.0
    %255 = vmatpush1.msra.mxu0 0.0
    %256 = vmatprep.subr.mxu0 0.0
    %257 = vmatpush1.msra.mxu0 0.0
    %258 = vmatprep.subr.mxu0 0.0
    %259 = vmatpush1.msra.mxu0 0.0
    %260 = vmatprep.mubr.f32.mxu0 0.0
    %261 = vmatmul.mubr.f32.gmra.mrb[0].mxu0 %v194
    %v262 = vpop.f32.mrb[0].mxu0
    %v263 = vadd.f32 %v190, %v262
    %v264 = vpop.f32.mrb[0].mxu0
    %265 = vdwg.mxu0
    %v266 = vrot.slane %v263, 4
    %v267 = vadd.f32 %v263, %v266
    %v268 = vrot.slane %v267, 2
    %v269 = vadd.f32 %v267, %v268
    %v270 = vrot.slane %v269, 1
    %v271 = vadd.f32 %v269, %v270
    %v272 = vmul.f32 %v271, 0.125
    %v273 = vmul.f32 %v263, %v263
    %v274 = vrot.slane %v273, 4
    %v275 = vadd.f32 %v273, %v274
    %v276 = vrot.slane %v275, 2
    %v277 = vadd.f32 %v275, %v276
    %v278 = vrot.slane %v277, 1
    %v279 = vadd.f32 %v277, %v278
    %v280 = vmul.f32 %v279, 0.125
    %v281 = vmul.f32 %v272, %v272
    %v282 = vsub.f32 %v280, %v281
    %v283 = vadd.f32 %v282, 1e-05
    %v284 = vrsqrt.pop %v283
    %v285 = vmul.f32 %v108, %v284
    %v286 = vmul.f32 %v272, %v285
    %v288 = vrot.slane %v286, 7
    %v290 = vsub.f32 %v108, %v288
    %v291 = vlaneseq
    %v292 = vshrl.u32 %v291, 7
    %v293 = vsub.s32 0, %v292
    %v294 = vrot.slane %v285, %v293
    %v295 = vmul.f32 %v263, %v294
    %v296 = vlaneseq
    %v297 = vshrl.u32 %v296, 7
    %v298 = vsub.s32 1, %v297
    %v299 = vrot.slane %v290, %v298
    %v300 = vadd.f32 %v295, %v299
    %v301 = vmul.f32 %v300, 0.2
    %v302 = vmax.f32 %v300, %v301
    %v303 = vld [vmem:[#allocation10] sm:$0xff]
    %v304 = vld [vmem:[#allocation10 + $0x8] sm:$0xff]
    %v305 = vld [vmem:[#allocation10 + $0x10] sm:$0xff]
    %v306 = vld [vmem:[#allocation10 + $0x18] sm:$0xff]
    %v307 = vld [vmem:[#allocation10 + $0x20] sm:$0xff]
    %v308 = vld [vmem:[#allocation10 + $0x28] sm:$0xff]
    %v309 = vld [vmem:[#allocation10 + $0x30] sm:$0xff]
    %v310 = vld [vmem:[#allocation10 + $0x38] sm:$0xff]
    %v311 = vld [vmem:[#allocation10 + $0x40] sm:$0xff]
    %v312 = vld [vmem:[#allocation10 + $0x48] sm:$0xff]
    %v313 = vld [vmem:[#allocation10 + $0x50] sm:$0xff]
    %v314 = vld [vmem:[#allocation10 + $0x58] sm:$0xff]
    %v315 = vld [vmem:[#allocation10 + $0x60] sm:$0xff]
    %v316 = vld [vmem:[#allocation10 + $0x68] sm:$0xff]
    %v317 = vld [vmem:[#allocation10 + $0x70] sm:$0xff]
    %v318 = vld [vmem:[#allocation10 + $0x78] sm:$0xff]
    %319 = vmatprep.subr.mxu0 0.0
    %320 = vmatpush1.msra.mxu0 %v303
    %321 = vmatprep.subr.mxu0 0.0
    %322 = vmatpush1.msra.mxu0 %v304
    %323 = vmatprep.subr.mxu0 0.0
    %324 = vmatpush1.msra.mxu0 %v305
    %325 = vmatprep.subr.mxu0 0.0
    %326 = vmatpush1.msra.mxu0 %v306
    %327 = vmatprep.subr.mxu0 0.0
    %328 = vmatpush1.msra.mxu0 %v307
    %329 = vmatprep.subr.mxu0 0.0
    %330 = vmatpush1.msra.mxu0 %v308
    %331 = vmatprep.subr.mxu0 0.0
    %332 = vmatpush1.msra.mxu0 %v309
    %333 = vmatprep.subr.mxu0 0.0
    %334 = vmatpush1.msra.mxu0 %v310
    %335 = vmatprep.subr.mxu0 0.0
    %336 = vmatpush1.msra.mxu0 %v311
    %337 = vmatprep.subr.mxu0 0.0
    %338 = vmatpush1.msra.mxu0 %v312
    %339 = vmatprep.subr.mxu0 0.0
    %340 = vmatpush1.msra.mxu0 %v313
    %341 = vmatprep.subr.mxu0 0.0
    %342 = vmatpush1.msra.mxu0 %v314
    %343 = vmatprep.subr.mxu0 0.0
    %344 = vmatpush1.msra.mxu0 %v315
    %345 = vmatprep.subr.mxu0 0.0
    %346 = vmatpush1.msra.mxu0 %v316
    %347 = vmatprep.subr.mxu0 0.0
    %348 = vmatpush1.msra.mxu0 %v317
    %349 = vmatprep.subr.mxu0 0.0
    %350 = vmatpush1.msra.mxu0 %v318
    %351 = vmatprep.subr.mxu0 0.0
    %352 = vmatpush1.msra.mxu0 0.0
    %353 = vmatprep.subr.mxu0 0.0
    %354 = vmatpush1.msra.mxu0 0.0
    %355 = vmatprep.subr.mxu0 0.0
    %356 = vmatpush1.msra.mxu0 0.0
    %357 = vmatprep.subr.mxu0 0.0
    %358 = vmatpush1.msra.mxu0 0.0
    %359 = vmatprep.subr.mxu0 0.0
    %360 = vmatpush1.msra.mxu0 0.0
    %361 = vmatprep.subr.mxu0 0.0
    %362 = vmatpush1.msra.mxu0 0.0
    %363 = vmatprep.subr.mxu0 0.0
    %364 = vmatpush1.msra.mxu0 0.0
    %365 = vmatprep.subr.mxu0 0.0
    %366 = vmatpush1.msra.mxu0 0.0
    %367 = vmatprep.subr.mxu0 0.0
    %368 = vmatpush1.msra.mxu0 0.0
    %369 = vmatprep.subr.mxu0 0.0
    %370 = vmatpush1.msra.mxu0 0.0
    %371 = vmatprep.subr.mxu0 0.0
    %372 = vmatpush1.msra.mxu0 0.0
    %373 = vmatprep.subr.mxu0 0.0
    %374 = vmatpush1.msra.mxu0 0.0
    %375 = vmatprep.subr.mxu0 0.0
    %376 = vmatpush1.msra.mxu0 0.0
    %377 = vmatprep.subr.mxu0 0.0
    %378 = vmatpush1.msra.mxu0 0.0
    %379 = vmatprep.subr.mxu0 0.0
    %380 = vmatpush1.msra.mxu0 0.0
    %381 = vmatprep.subr.mxu0 0.0
    %382 = vmatpush1.msra.mxu0 0.0
    %383 = vmatprep.mubr.f32.mxu0 0.0
    %384 = vmatmul.mubr.f32.gmra.mrb[0].mxu0 %v302
    %v385 = vpop.f32.mrb[0].mxu0
    %v386 = vadd.f32 0.0, %v385
    %v387 = vpop.f32.mrb[0].mxu0
    %388 = vdwg.mxu0
    %v389 = vrot.slane %v386, 4
    %v390 = vadd.f32 %v386, %v389
    %v391 = vrot.slane %v390, 2
    %v392 = vadd.f32 %v390, %v391
    %v393 = vrot.slane %v392, 1
    %v394 = vadd.f32 %v392, %v393
    %v395 = vmul.f32 %v394, 0.125
    %v396 = vmul.f32 %v386, %v386
    %v397 = vrot.slane %v396, 4
    %v398 = vadd.f32 %v396, %v397
    %v399 = vrot.slane %v398, 2
    %v400 = vadd.f32 %v398, %v399
    %v401 = vrot.slane %v400, 1
    %v402 = vadd.f32 %v400, %v401
    %v403 = vmul.f32 %v402, 0.125
    %v404 = vmul.f32 %v395, %v395
    %v405 = vsub.f32 %v403, %v404
    %v406 = vadd.f32 %v405, 1e-05
    %v407 = vrsqrt.pop %v406
    %v408 = vmul.f32 %v108, %v407
    %v409 = vmul.f32 %v395, %v408
    %v411 = vrot.slane %v409, 7
    %v413 = vsub.f32 %v108, %v411
    %v414 = vlaneseq
    %v415 = vshrl.u32 %v414, 7
    %v416 = vsub.s32 2, %v415
    %v417 = vrot.slane %v408, %v416
    %v418 = vmul.f32 %v386, %v417
    %v419 = vlaneseq
    %v420 = vshrl.u32 %v419, 7
    %v421 = vsub.s32 3, %v420
    %v422 = vrot.slane %v413, %v421
    %v423 = vadd.f32 %v418, %v422
    %v424 = vmul.f32 %v423, 0.2
    %v425 = vmax.f32 %v423, %v424
    %v426 = vld [vmem:[#allocation11] sm:$0xff]
    %v427 = vld [vmem:[#allocation11 + $0x8] sm:$0xff]
    %v428 = vld [vmem:[#allocation11 + $0x10] sm:$0xff]
    %v429 = vld [vmem:[#allocation11 + $0x18] sm:$0xff]
    %v430 = vld [vmem:[#allocation11 + $0x20] sm:$0xff]
    %v431 = vld [vmem:[#allocation11 + $0x28] sm:$0xff]
    %v432 = vld [vmem:[#allocation11 + $0x30] sm:$0xff]
    %v433 = vld [vmem:[#allocation11 + $0x38] sm:$0xff]
    %v434 = vld [vmem:[#allocation11 + $0x40] sm:$0xff]
    %v435 = vld [vmem:[#allocation11 + $0x48] sm:$0xff]
    %v436 = vld [vmem:[#allocation11 + $0x50] sm:$0xff]
    %v437 = vld [vmem:[#allocation11 + $0x58] sm:$0xff]
    %v438 = vld [vmem:[#allocation11 + $0x60] sm:$0xff]
    %v439 = vld [vmem:[#allocation11 + $0x68] sm:$0xff]
    %v440 = vld [vmem:[#allocation11 + $0x70] sm:$0xff]
    %v441 = vld [vmem:[#allocation11 + $0x78] sm:$0xff]
    %v442 = vld [vmem:[%s7] sm:$0x1]
    %v444 = vlaneseq
    %v445 = vshrl.u32 %v444, 7
    %v446 = vsub.s32 0, %v445
    %v447 = vrot.slane %v442, %v446
    %449 = vmatprep.subr.mxu0 0.0
    %450 = vmatpush1.msra.mxu0 %v426
    %451 = vmatprep.subr.mxu0 0.0
    %452 = vmatpush1.msra.mxu0 %v427
    %453 = vmatprep.subr.mxu0 0.0
    %454 = vmatpush1.msra.mxu0 %v428
    %455 = vmatprep.subr.mxu0 0.0
    %456 = vmatpush1.msra.mxu0 %v429
    %457 = vmatprep.subr.mxu0 0.0
    %458 = vmatpush1.msra.mxu0 %v430
    %459 = vmatprep.subr.mxu0 0.0
    %460 = vmatpush1.msra.mxu0 %v431
    %461 = vmatprep.subr.mxu0 0.0
    %462 = vmatpush1.msra.mxu0 %v432
    %463 = vmatprep.subr.mxu0 0.0
    %464 = vmatpush1.msra.mxu0 %v433
    %465 = vmatprep.subr.mxu0 0.0
    %466 = vmatpush1.msra.mxu0 %v434
    %467 = vmatprep.subr.mxu0 0.0
    %468 = vmatpush1.msra.mxu0 %v435
    %469 = vmatprep.subr.mxu0 0.0
    %470 = vmatpush1.msra.mxu0 %v436
    %471 = vmatprep.subr.mxu0 0.0
    %472 = vmatpush1.msra.mxu0 %v437
    %473 = vmatprep.subr.mxu0 0.0
    %474 = vmatpush1.msra.mxu0 %v438
    %475 = vmatprep.subr.mxu0 0.0
    %476 = vmatpush1.msra.mxu0 %v439
    %477 = vmatprep.subr.mxu0 0.0
    %478 = vmatpush1.msra.mxu0 %v440
    %479 = vmatprep.subr.mxu0 0.0
    %480 = vmatpush1.msra.mxu0 %v441
    %481 = vmatprep.subr.mxu0 0.0
    %482 = vmatpush1.msra.mxu0 0.0
    %483 = vmatprep.subr.mxu0 0.0
    %484 = vmatpush1.msra.mxu0 0.0
    %485 = vmatprep.subr.mxu0 0.0
    %486 = vmatpush1.msra.mxu0 0.0
    %487 = vmatprep.subr.mxu0 0.0
    %488 = vmatpush1.msra.mxu0 0.0
    %489 = vmatprep.subr.mxu0 0.0
    %490 = vmatpush1.msra.mxu0 0.0
    %491 = vmatprep.subr.mxu0 0.0
    %492 = vmatpush1.msra.mxu0 0.0
    %493 = vmatprep.subr.mxu0 0.0
    %494 = vmatpush1.msra.mxu0 0.0
    %495 = vmatprep.subr.mxu0 0.0
    %496 = vmatpush1.msra.mxu0 0.0
    %497 = vmatprep.subr.mxu0 0.0
    %498 = vmatpush1.msra.mxu0 0.0
    %499 = vmatprep.subr.mxu0 0.0
    %500 = vmatpush1.msra.mxu0 0.0
    %501 = vmatprep.subr.mxu0 0.0
    %502 = vmatpush1.msra.mxu0 0.0
    %503 = vmatprep.subr.mxu0 0.0
    %504 = vmatpush1.msra.mxu0 0.0
    %505 = vmatprep.subr.mxu0 0.0
    %506 = vmatpush1.msra.mxu0 0.0
    %507 = vmatprep.subr.mxu0 0.0
    %508 = vmatpush1.msra.mxu0 0.0
    %509 = vmatprep.subr.mxu0 0.0
    %510 = vmatpush1.msra.mxu0 0.0
    %511 = vmatprep.subr.mxu0 0.0
    %512 = vmatpush1.msra.mxu0 0.0
    %513 = vmatprep.mubr.f32.mxu0 0.0
    %514 = vmatmul.mubr.f32.gmra.mrb[0].mxu0 %v425
    %v515 = vpop.f32.mrb[0].mxu0
    %v516 = vadd.f32 %v447, %v515
    %v517 = vpop.f32.mrb[0].mxu0
    %518 = vdwg.mxu0
    %v519 = vtanh.pop %v516
    %520 = vst [vmem:[#allocation13] sm:$0xff] %v519
    // Predicated region
    $region58: #{laso_forward.1} parent=1 // pred_check
      _
    $region59: #{laso_forward.1} parent=1 // pred_check_branch
      %522 = sbr.rel (0) target = $region61
    $region60: #{laso_forward.1} parent=1 // pred_region
      %s524 = ssub.s32 128, 128
      %525 = vsyncadd [#allocation4], %s524
      %s527 = sshll.u32 [#allocation13], 4
      %s528 = int_to_ptr.vmem [resolvable:$true] %s527
      %530 = dma.vmem_to_hbm [thread:$0]  %s528, 128, %s8, [#allocation4]
    $region61: #{laso_forward.1} parent=1 // pred_fallthru
      _
    // Predicated region
    $region62: #{laso_forward.1} parent=1 // pred_check
      _
    $region63: #{laso_forward.1} parent=1 // pred_check_branch
      %532 = sbr.rel (0) target = $region65
    $region64: #{laso_forward.1} parent=1 // pred_region
      %533 = dma.done [#allocation4], 128
    $region65: #{laso_forward.1} parent=1 // pred_fallthru
      _
    %534 = vsyncpa [#allocation3], 1
    %535 = vsyncpa [#allocation6], 1
    %536 = vsyncpa [#allocation9], 1
    %537 = vsyncpa [#allocation12], 1
    %538 = vsyncpa [#allocation4], 1

</llo_original>
